<compile_context>
chip_gen: v7x
topology: tpu7x:2x2x1
jax: 0.10.0
libtpu: 0.0.40
codegen_flags: <defaults>
</compile_context>

<pallas_src>
import functools

import jax
import jax.numpy as jnp
from jax.experimental import pallas as pl
from jax.experimental.pallas import tpu as pltpu


# ----------------------------------------------------------------------------
# Fused kernel: embedding gather + all conv heads + ReLU + MaxPool + concat
#               (+ dropout + Linear when use_element=False)
# ----------------------------------------------------------------------------
def _textcnn_fused_kernel(*refs, window_sizes, seq_len, feature_size, use_element):
    if use_element:
        tok_ref, table_ref, wconv_ref, bconv_ref, o_ref = refs
    else:
        (tok_ref, table_ref, wconv_ref, bconv_ref,
         drop_ref, wfc_ref, bfc_ref, o_ref) = refs

    L, F = seq_len, feature_size
    tbL = tok_ref.shape[0]                 # tb * L (tokens pre-flattened to (B*L, 1))
    tb = tbL // L
    vocab = table_ref.shape[0]

    # ---- embedding lookup fused in-kernel: one-hot(tokens) @ table on the MXU ----
    tok = tok_ref[...]                                               # (tb*L, 1) int32
    onehot = jax.lax.broadcasted_iota(jnp.int32, (tbL, vocab), 1) == tok
    emb = jnp.dot(onehot.astype(jnp.float32), table_ref[...],
                  preferred_element_type=jnp.float32)                # (tb*L, E) f32

    # ---- all taps of all conv heads in ONE lane-dense bf16 MXU matmul ----
    # wconv_ref: (E, sum(h)*F) bf16, columns ordered [head0: tap0..h0-1 | head1: ... ]
    y = jnp.dot(emb.astype(jnp.bfloat16), wconv_ref[...],
                preferred_element_type=jnp.float32)                  # (tb*L, T*F) f32
    y = y.reshape(tb, L, y.shape[-1])      # tile-aligned split (L is a multiple of 8)

    # ---- per-head tap shift-add (VPU), max-pool over valid positions ----
    # bias-add + ReLU are hoisted AFTER the pool (bias const over L, ReLU monotone).
    feats = []
    col = 0
    for h in window_sizes:
        l_out = L - h + 1
        acc = y[:, 0:l_out, col * F:(col + 1) * F]
        for k in range(1, h):
            acc = acc + y[:, k:k + l_out, (col + k) * F:(col + k + 1) * F]
        feats.append(jnp.max(acc, axis=1))                           # (tb, F)
        col += h
    cat = jnp.concatenate(feats, axis=1)                             # (tb, n_heads*F)
    cat = jnp.maximum(cat + bconv_ref[...], 0.0)                     # bias + ReLU

    if use_element:
        o_ref[...] = cat
    else:
        # inverted dropout: drop_ref holds precomputed keep/(1-p) scales
        x = (cat * drop_ref[...]).astype(jnp.bfloat16)
        o_ref[...] = (jnp.dot(x, wfc_ref[...], preferred_element_type=jnp.float32)
                      + bfc_ref[...])


def _pick_batch_tile(batch):
    # Output blocks are (tb, C): keep tb a multiple of 8 (f32 sublane tile) or the
    # full batch.  When B >= 8 this yields a multi-step grid whose "parallel" axis
    # shards batch tiles across v7x's two TensorCores (no-op on v5e/v6e).
    if batch < 8 or batch % 8 != 0:
        return batch
    for t in (128, 64, 32, 16, 8):
        if batch % t == 0:
            return t
    return batch


def textcnn_fused(tokens, table, w_conv, b_conv, fc_w=None, fc_b=None,
                  drop_scale=None, *, window_sizes, use_element=False,
                  batch_tile=None):
    B, L = tokens.shape
    V, E = table.shape
    TF = w_conv.shape[1]                   # sum(window_sizes) * F
    D = b_conv.shape[1]                    # len(window_sizes) * F
    F = D // len(window_sizes)
    tb = batch_tile if batch_tile is not None else _pick_batch_tile(B)
    assert B % tb == 0, (B, tb)
    grid = (B // tb,)

    # tokens as a lane-1 column; rows of one batch tile are contiguous.
    tok_col = tokens.reshape(B * L, 1).astype(jnp.int32)

    kernel = functools.partial(
        _textcnn_fused_kernel, window_sizes=tuple(window_sizes),
        seq_len=L, feature_size=F, use_element=use_element)

    in_specs = [
        pl.BlockSpec((tb * L, 1), lambda b: (b, 0)),   # tokens (per batch tile)
        pl.BlockSpec((V, E), lambda b: (0, 0)),        # embedding table (VMEM resident)
        pl.BlockSpec((E, TF), lambda b: (0, 0)),       # all conv tap weights (bf16)
        pl.BlockSpec((1, D), lambda b: (0, 0)),        # all conv biases
    ]
    args = [tok_col, table, w_conv, b_conv]

    if use_element:
        out_dim = D
    else:
        C = fc_w.shape[1]
        out_dim = C
        in_specs += [
            pl.BlockSpec((tb, D), lambda b: (b, 0)),   # dropout keep/(1-p) scales
            pl.BlockSpec((D, C), lambda b: (0, 0)),    # fc weight (bf16)
            pl.BlockSpec((1, C), lambda b: (0, 0)),    # fc bias
        ]
        args += [drop_scale, fc_w, fc_b]

    return pl.pallas_call(
        kernel,
        out_shape=jax.ShapeDtypeStruct((B, out_dim), jnp.float32),
        grid=grid,
        in_specs=in_specs,
        out_specs=pl.BlockSpec((tb, out_dim), lambda b: (b, 0)),
        compiler_params=pltpu.CompilerParams(
            dimension_semantics=("parallel",),         # batch tiles -> 2 TCs on v7x
            vmem_limit_bytes=32 * 1024 * 1024,         # explicit; fits v7x's 64 MiB VMEM
        ),
    )(*args)


# ----------------------------------------------------------------------------
# Params / forward
# ----------------------------------------------------------------------------
def init_params(key, cfg):
    E, F, C = cfg["embedding_size"], cfg["feature_size"], cfg["num_class"]
    ws = tuple(cfg["window_sizes"])
    V = cfg["vocab_size"]
    D = F * len(ws)
    keys = jax.random.split(key, 3 + 2 * len(ws))

    table = jax.random.normal(keys[0], (V, E), jnp.float32)          # nn.Embedding: N(0,1)

    w_cols, b_cols = [], []
    for i, h in enumerate(ws):
        kw, kb = keys[3 + 2 * i], keys[4 + 2 * i]
        bound = 1.0 / float((E * h) ** 0.5)                          # ~torch Conv1d init
        w = jax.random.uniform(kw, (h, E, F), jnp.float32, -bound, bound)
        b = jax.random.uniform(kb, (1, F), jnp.float32, -bound, bound)
        # (h, E, F) -> (E, h*F): taps contiguous along the lane (feature) axis
        w_cols.append(jnp.transpose(w, (1, 0, 2)).reshape(E, h * F))
        b_cols.append(b)

    fc_bound = 1.0 / float(D ** 0.5)
    return {
        "embedding": table,                                                  # (V, E) f32
        "conv_w": jnp.concatenate(w_cols, axis=1).astype(jnp.bfloat16),      # (E, sum(h)*F)
        "conv_b": jnp.concatenate(b_cols, axis=1),                           # (1, D) f32
        "fc_w": jax.random.uniform(keys[1], (D, C), jnp.float32,
                                   -fc_bound, fc_bound).astype(jnp.bfloat16),
        "fc_b": jax.random.uniform(keys[2], (1, C), jnp.float32,
                                   -fc_bound, fc_bound),
    }


def textcnn_forward(params, tokens, cfg, dropout_key=None):
    ws = tuple(cfg["window_sizes"])
    if cfg["use_element"]:
        return textcnn_fused(tokens, params["embedding"], params["conv_w"],
                             params["conv_b"], window_sizes=ws, use_element=True)

    B = tokens.shape[0]
    D = cfg["feature_size"] * len(ws)
    p = float(cfg["dropout_rate"])
    # F.dropout defaults to training=True -> inverted dropout is always applied.
    # The mask is drawn host-side with jax.random from a per-call key (the in-kernel
    # hardware PRNG, pltpu.prng_*, has no interpret-mode lowering) and handed to the
    # fused kernel as a keep/(1-p) scale.
    if dropout_key is not None and p > 0.0:
        keep = jax.random.bernoulli(dropout_key, 1.0 - p, (B, D))
        drop_scale = keep.astype(jnp.float32) / (1.0 - p)
    else:
        drop_scale = jnp.ones((B, D), jnp.float32)

    return textcnn_fused(tokens, params["embedding"], params["conv_w"],
                         params["conv_b"], params["fc_w"], params["fc_b"],
                         drop_scale, window_sizes=ws, use_element=False)


# ----------------------------------------------------------------------------
# Pure-JAX reference in the original PyTorch op order (conv+bias -> ReLU -> pool)
# ----------------------------------------------------------------------------
def textcnn_reference(params, tokens, cfg, dropout_key=None):
    ws = tuple(cfg["window_sizes"])
    F = cfg["feature_size"]
    L = tokens.shape[1]
    emb = params["embedding"][tokens]                                # (B, L, E) f32
    w_all = params["conv_w"].astype(jnp.float32)
    feats, col = [], 0
    for hi, h in enumerate(ws):
        l_out = L - h + 1
        conv = 0.0
        for k in range(h):
            wk = w_all[:, (col + k) * F:(col + k + 1) * F]           # (E, F)
            conv = conv + jnp.einsum("ble,ef->blf", emb[:, k:k + l_out, :], wk)
        conv = conv + params["conv_b"][:, hi * F:(hi + 1) * F][:, None, :]
        conv = jnp.maximum(conv, 0.0)
        feats.append(jnp.max(conv, axis=1))
        col += h
    cat = jnp.concatenate(feats, axis=1)
    if cfg["use_element"]:
        return cat
    B, D = cat.shape
    p = float(cfg["dropout_rate"])
    if dropout_key is not None and p > 0.0:
        keep = jax.random.bernoulli(dropout_key, 1.0 - p, (B, D))
        cat = cat * keep.astype(jnp.float32) / (1.0 - p)
    return cat @ params["fc_w"].astype(jnp.float32) + params["fc_b"]


if __name__ == "__main__":
    cfg = dict(
        vocab_size=50,
        embedding_size=32,
        feature_size=16,
        window_sizes=(2, 3, 4),
        max_text_len=16,
        num_class=8,
        dropout_rate=0.5,
        use_element=False,
    )
    key = jax.random.PRNGKey(0)
    k_par, k_tok, k_drop = jax.random.split(key, 3)
    params = init_params(k_par, cfg)

    tokens = jax.random.randint(
        k_tok, (2, cfg["max_text_len"]), 0, cfg["vocab_size"], dtype=jnp.int32)

    out = textcnn_forward(params, tokens, cfg, dropout_key=k_drop)
    jax.block_until_ready(out)
    assert out.shape == (2, cfg["num_class"]), out.shape

    # Correctness check vs. pure-JAX reference (same dropout key -> same mask).
    # Tolerance covers the bf16 MXU matmuls (f32 accumulation) vs. the f32 reference.
    ref = textcnn_reference(params, tokens, cfg, dropout_key=k_drop)
    assert jnp.allclose(out, ref, rtol=1e-1, atol=1e-1), (out, ref)

    print("KERNEL_OK")
</pallas_src>

<mosaic_0001>
module attributes {stable_mosaic.version = 11 : i64} {
  func.func @_textcnn_fused_kernel(%arg0: i32, %arg1: memref<32x1xi32, #tpu.memory_space<vmem>>, %arg2: memref<50x32xf32, #tpu.memory_space<vmem>>, %arg3: memref<32x144xbf16, #tpu.memory_space<vmem>>, %arg4: memref<1x48xf32, #tpu.memory_space<vmem>>, %arg5: memref<2x48xf32, #tpu.memory_space<vmem>>, %arg6: memref<48x8xbf16, #tpu.memory_space<vmem>>, %arg7: memref<1x8xf32, #tpu.memory_space<vmem>>, %arg8: memref<2x8xf32, #tpu.memory_space<vmem>>) attributes {dimension_semantics = [#tpu.dimension_semantics<parallel>], iteration_bounds = array<i64: 1>, scalar_prefetch = 0 : i64, scratch_operands = 0 : i64, tpu.core_type = #tpu.core_type<tc>, window_params = [{transform_indices = @transform_0, window_bounds = array<i64: 32, 1>}, {pipeline_mode = #tpu.pipeline_mode<synchronous>, transform_indices = @transform_1, window_bounds = array<i64: 50, 32>}, {pipeline_mode = #tpu.pipeline_mode<synchronous>, transform_indices = @transform_2, window_bounds = array<i64: 32, 144>}, {pipeline_mode = #tpu.pipeline_mode<synchronous>, transform_indices = @transform_3, window_bounds = array<i64: 1, 48>}, {transform_indices = @transform_4, window_bounds = array<i64: 2, 48>}, {pipeline_mode = #tpu.pipeline_mode<synchronous>, transform_indices = @transform_5, window_bounds = array<i64: 48, 8>}, {pipeline_mode = #tpu.pipeline_mode<synchronous>, transform_indices = @transform_6, window_bounds = array<i64: 1, 8>}, {transform_indices = @transform_7, window_bounds = array<i64: 2, 8>}]} {
    %c0 = arith.constant 0 : index
    %c0_0 = arith.constant 0 : index
    %0 = vector.load %arg1[%c0, %c0_0] : memref<32x1xi32, #tpu.memory_space<vmem>>, vector<32x1xi32>
    %1 = tpu.iota {dimensions = array<i32: 1>} : vector<32x50xi32>
    %2 = vector.broadcast %0 : vector<32x1xi32> to vector<32x50xi32>
    %3 = arith.cmpi eq, %1, %2 : vector<32x50xi32>
    %4 = arith.extui %3 : vector<32x50xi1> to vector<32x50xi32>
    %5 = arith.sitofp %4 : vector<32x50xi32> to vector<32x50xf32>
    %c0_1 = arith.constant 0 : index
    %c0_2 = arith.constant 0 : index
    %6 = vector.load %arg2[%c0_1, %c0_2] : memref<50x32xf32, #tpu.memory_space<vmem>>, vector<50x32xf32>
    %cst = arith.constant dense<0.000000e+00> : vector<32x32xf32>
    %7 = tpu.matmul %5, %6, %cst {dimension_numbers = #tpu.dot_dimension_numbers<[1], [0], [0], [1], [0, 0, 1, 1], [], []>} : vector<32x50xf32>, vector<50x32xf32>, vector<32x32xf32> -> vector<32x32xf32>
    %8 = arith.truncf %7 : vector<32x32xf32> to vector<32x32xbf16>
    %c0_3 = arith.constant 0 : index
    %c0_4 = arith.constant 0 : index
    %9 = vector.load %arg3[%c0_3, %c0_4] : memref<32x144xbf16, #tpu.memory_space<vmem>>, vector<32x144xbf16>
    %cst_5 = arith.constant dense<0.000000e+00> : vector<32x144xf32>
    %10 = tpu.matmul %8, %9, %cst_5 {dimension_numbers = #tpu.dot_dimension_numbers<[1], [0], [0], [1], [0, 0, 1, 1], [], []>} : vector<32x32xbf16>, vector<32x144xbf16>, vector<32x144xf32> -> vector<32x144xf32>
    %11 = vector.shape_cast %10 : vector<32x144xf32> to vector<2x16x144xf32>
    %12 = vector.extract_strided_slice %11 {offsets = [0, 0, 0], sizes = [2, 15, 16], strides = [1, 1, 1]} : vector<2x16x144xf32> to vector<2x15x16xf32>
    %13 = vector.extract_strided_slice %11 {offsets = [0, 1, 16], sizes = [2, 15, 16], strides = [1, 1, 1]} : vector<2x16x144xf32> to vector<2x15x16xf32>
    %14 = arith.addf %12, %13 : vector<2x15x16xf32>
    %cst_6 = arith.constant dense<0xFF800000> : vector<2x16xf32>
    %15 = vector.multi_reduction <maximumf>, %14, %cst_6 [1] : vector<2x15x16xf32> to vector<2x16xf32>
    %16 = vector.extract_strided_slice %11 {offsets = [0, 0, 32], sizes = [2, 14, 16], strides = [1, 1, 1]} : vector<2x16x144xf32> to vector<2x14x16xf32>
    %17 = vector.extract_strided_slice %11 {offsets = [0, 1, 48], sizes = [2, 14, 16], strides = [1, 1, 1]} : vector<2x16x144xf32> to vector<2x14x16xf32>
    %18 = arith.addf %16, %17 : vector<2x14x16xf32>
    %19 = vector.extract_strided_slice %11 {offsets = [0, 2, 64], sizes = [2, 14, 16], strides = [1, 1, 1]} : vector<2x16x144xf32> to vector<2x14x16xf32>
    %20 = arith.addf %18, %19 : vector<2x14x16xf32>
    %cst_7 = arith.constant dense<0xFF800000> : vector<2x16xf32>
    %21 = vector.multi_reduction <maximumf>, %20, %cst_7 [1] : vector<2x14x16xf32> to vector<2x16xf32>
    %22 = vector.extract_strided_slice %11 {offsets = [0, 0, 80], sizes = [2, 13, 16], strides = [1, 1, 1]} : vector<2x16x144xf32> to vector<2x13x16xf32>
    %23 = vector.extract_strided_slice %11 {offsets = [0, 1, 96], sizes = [2, 13, 16], strides = [1, 1, 1]} : vector<2x16x144xf32> to vector<2x13x16xf32>
    %24 = arith.addf %22, %23 : vector<2x13x16xf32>
    %25 = vector.extract_strided_slice %11 {offsets = [0, 2, 112], sizes = [2, 13, 16], strides = [1, 1, 1]} : vector<2x16x144xf32> to vector<2x13x16xf32>
    %26 = arith.addf %24, %25 : vector<2x13x16xf32>
    %27 = vector.extract_strided_slice %11 {offsets = [0, 3, 128], sizes = [2, 13, 16], strides = [1, 1, 1]} : vector<2x16x144xf32> to vector<2x13x16xf32>
    %28 = arith.addf %26, %27 : vector<2x13x16xf32>
    %cst_8 = arith.constant dense<0xFF800000> : vector<2x16xf32>
    %29 = vector.multi_reduction <maximumf>, %28, %cst_8 [1] : vector<2x13x16xf32> to vector<2x16xf32>
    %30 = tpu.concatenate %15, %21, %29 in 1 : vector<2x16xf32>, vector<2x16xf32>, vector<2x16xf32> -> vector<2x48xf32>
    %c0_9 = arith.constant 0 : index
    %c0_10 = arith.constant 0 : index
    %31 = vector.load %arg4[%c0_9, %c0_10] : memref<1x48xf32, #tpu.memory_space<vmem>>, vector<1x48xf32>
    %32 = vector.broadcast %31 : vector<1x48xf32> to vector<2x48xf32>
    %33 = arith.addf %30, %32 : vector<2x48xf32>
    %cst_11 = arith.constant 0.000000e+00 : f32
    %34 = vector.broadcast %cst_11 : f32 to vector<2x48xf32>
    %35 = arith.maximumf %33, %34 : vector<2x48xf32>
    %c0_12 = arith.constant 0 : index
    %c0_13 = arith.constant 0 : index
    %36 = vector.load %arg5[%c0_12, %c0_13] : memref<2x48xf32, #tpu.memory_space<vmem>>, vector<2x48xf32>
    %37 = arith.mulf %35, %36 : vector<2x48xf32>
    %38 = arith.truncf %37 : vector<2x48xf32> to vector<2x48xbf16>
    %c0_14 = arith.constant 0 : index
    %c0_15 = arith.constant 0 : index
    %39 = vector.load %arg6[%c0_14, %c0_15] : memref<48x8xbf16, #tpu.memory_space<vmem>>, vector<48x8xbf16>
    %cst_16 = arith.constant dense<0.000000e+00> : vector<2x8xf32>
    %40 = tpu.matmul %38, %39, %cst_16 {dimension_numbers = #tpu.dot_dimension_numbers<[1], [0], [0], [1], [0, 0, 1, 1], [], []>} : vector<2x48xbf16>, vector<48x8xbf16>, vector<2x8xf32> -> vector<2x8xf32>
    %c0_17 = arith.constant 0 : index
    %c0_18 = arith.constant 0 : index
    %41 = vector.load %arg7[%c0_17, %c0_18] : memref<1x8xf32, #tpu.memory_space<vmem>>, vector<1x8xf32>
    %42 = vector.broadcast %41 : vector<1x8xf32> to vector<2x8xf32>
    %43 = arith.addf %40, %42 : vector<2x8xf32>
    %c0_19 = arith.constant 0 : index
    %c0_20 = arith.constant 0 : index
    %44 = vector.load %arg8[%c0_19, %c0_20] : memref<2x8xf32, #tpu.memory_space<vmem>>, vector<2x8xf32>
    tpu.vector_store %arg8[%c0_19, %c0_20], %43 {strides = array<i32>} : memref<2x8xf32, #tpu.memory_space<vmem>>, vector<2x8xf32>,
    return
  }
  func.func @transform_0(%arg0: i32) -> (i32, i32) {
    %c0_i32 = arith.constant 0 : i32
    %c0_i32_0 = arith.constant 0 : i32
    return %arg0, %c0_i32 : i32, i32
  }
  func.func @transform_1(%arg0: i32) -> (i32, i32) {
    %c0_i32 = arith.constant 0 : i32
    %c0_i32_0 = arith.constant 0 : i32
    %c0_i32_1 = arith.constant 0 : i32
    return %c0_i32, %c0_i32_0 : i32, i32
  }
  func.func @transform_2(%arg0: i32) -> (i32, i32) {
    %c0_i32 = arith.constant 0 : i32
    %c0_i32_0 = arith.constant 0 : i32
    %c0_i32_1 = arith.constant 0 : i32
    return %c0_i32, %c0_i32_0 : i32, i32
  }
  func.func @transform_3(%arg0: i32) -> (i32, i32) {
    %c0_i32 = arith.constant 0 : i32
    %c0_i32_0 = arith.constant 0 : i32
    %c0_i32_1 = arith.constant 0 : i32
    return %c0_i32, %c0_i32_0 : i32, i32
  }
  func.func @transform_4(%arg0: i32) -> (i32, i32) {
    %c0_i32 = arith.constant 0 : i32
    %c0_i32_0 = arith.constant 0 : i32
    return %arg0, %c0_i32 : i32, i32
  }
  func.func @transform_5(%arg0: i32) -> (i32, i32) {
    %c0_i32 = arith.constant 0 : i32
    %c0_i32_0 = arith.constant 0 : i32
    %c0_i32_1 = arith.constant 0 : i32
    return %c0_i32, %c0_i32_0 : i32, i32
  }
  func.func @transform_6(%arg0: i32) -> (i32, i32) {
    %c0_i32 = arith.constant 0 : i32
    %c0_i32_0 = arith.constant 0 : i32
    %c0_i32_1 = arith.constant 0 : i32
    return %c0_i32, %c0_i32_0 : i32, i32
  }
  func.func @transform_7(%arg0: i32) -> (i32, i32) {
    %c0_i32 = arith.constant 0 : i32
    %c0_i32_0 = arith.constant 0 : i32
    return %arg0, %c0_i32 : i32, i32
  }
}

</mosaic_0001>

<llo_original>
// kernel: tpu_custom_call.1
$region0: #{tpu_custom_call.1}
  #allocation0 [shape = 'u32[]', space=smem, size = 0x4, offset = 0x4, fixed_abs, tag = 'smem constant byte address 0x4 - core index']
  #allocation1 [shape = 'u32[144,128]{1,0:T(1,128)}', space=vmem, size = 0x12000, scoped, tag = 'internal scratch']
  %s0 = inlined_call_operand.vmem [shape: s32[32,1], index: 0, kind: input, shape index: {}]
  %s1 = inlined_call_operand.vmem [shape: f32[50,32], index: 1, kind: input, shape index: {}]
  %s2 = inlined_call_operand.vmem [shape: bf16[32,144], index: 2, kind: input, shape index: {}]
  %s3 = inlined_call_operand.vmem [shape: f32[1,48], index: 3, kind: input, shape index: {}]
  %s4 = inlined_call_operand.vmem [shape: f32[2,48], index: 4, kind: input, shape index: {}]
  %s5 = inlined_call_operand.vmem [shape: bf16[48,8], index: 5, kind: input, shape index: {}]
  %s6 = inlined_call_operand.vmem [shape: f32[1,8], index: 6, kind: input, shape index: {}]
  %s7 = inlined_call_operand.hbm [shape: f32[2,8], index: 7, kind: output, shape index: {}]
  %s8 = sld [smem:[#allocation0]]
  $region38: #{tpu_custom_call.1} parent=0
    _
  %s10 = ssub.s32 1, %s8
  %s11 = scalar_select 0, %s10, %s8
  $region1: #{tpu_custom_call.1} parent=0
    #allocation2 [shape = 'u8[1024]{0}', space=vmem, size = 0x400, scoped, tag = 'output window, operand 0, single buffered']
    #allocation3 [shape = 's32[1]{0}', space=sflag, size = 0x4, scoped, tag = 'scoped memory for tpu_custom_call.1']
    %12 = vsyncpa [#allocation3], 0
    // Predicated region
    $region2: #{tpu_custom_call.1} parent=1 // pred_check
      _
    $region3: #{tpu_custom_call.1} parent=1 // pred_check_branch
      %14 = sbr.rel (0) target = $region5
    $region4: #{tpu_custom_call.1} parent=1 // pred_region
      _
    $region5: #{tpu_custom_call.1} parent=1 // pred_fallthru
      _
    // Predicated region
    $region6: #{tpu_custom_call.1} parent=1 // pred_check
      _
    $region7: #{tpu_custom_call.1} parent=1 // pred_check_branch
      %16 = sbr.rel (0) target = $region9
    $region8: #{tpu_custom_call.1} parent=1 // pred_region
      _
    $region9: #{tpu_custom_call.1} parent=1 // pred_fallthru
      _
    // Predicated region
    $region10: #{tpu_custom_call.1} parent=1 // pred_check
      _
    $region11: #{tpu_custom_call.1} parent=1 // pred_check_branch
      %18 = sbr.rel (0) target = $region13
    $region12: #{tpu_custom_call.1} parent=1 // pred_region
      _
    $region13: #{tpu_custom_call.1} parent=1 // pred_fallthru
      _
    // Predicated region
    $region14: #{tpu_custom_call.1} parent=1 // pred_check
      _
    $region15: #{tpu_custom_call.1} parent=1 // pred_check_branch
      %20 = sbr.rel (0) target = $region17
    $region16: #{tpu_custom_call.1} parent=1 // pred_region
      _
    $region17: #{tpu_custom_call.1} parent=1 // pred_fallthru
      _
    // Predicated region
    $region18: #{tpu_custom_call.1} parent=1 // pred_check
      _
    $region19: #{tpu_custom_call.1} parent=1 // pred_check_branch
      %22 = sbr.rel (0) target = $region21
    $region20: #{tpu_custom_call.1} parent=1 // pred_region
      _
    $region21: #{tpu_custom_call.1} parent=1 // pred_fallthru
      _
    // Predicated region
    $region22: #{tpu_custom_call.1} parent=1 // pred_check
      _
    $region23: #{tpu_custom_call.1} parent=1 // pred_check_branch
      %24 = sbr.rel (0) target = $region25
    $region24: #{tpu_custom_call.1} parent=1 // pred_region
      _
    $region25: #{tpu_custom_call.1} parent=1 // pred_fallthru
      _
    // Predicated region
    $region26: #{tpu_custom_call.1} parent=1 // pred_check
      _
    $region27: #{tpu_custom_call.1} parent=1 // pred_check_branch
      %26 = sbr.rel (0) target = $region29
    $region28: #{tpu_custom_call.1} parent=1 // pred_region
      _
    $region29: #{tpu_custom_call.1} parent=1 // pred_fallthru
      _
    %v28 = vld [vmem:[%s0] sm:$0xff]
    %v29 = vld [vmem:[%s0 + $0x8] sm:$0xff]
    %v30 = vld [vmem:[%s0 + $0x10] sm:$0xff]
    %v31 = vld [vmem:[%s0 + $0x18] sm:$0xff]
    %v32 = vlaneseq
    %v33 = vand.u32 %v32, 127
    %34 = vset.pattern.permute.xlu0 0
    %35 = vperm.xlu0 %34, %v28
    %v36 = vpop.permute.xlu0 %35
    %37 = vset.pattern.permute.xlu0 0
    %38 = vperm.xlu0 %37, %v29
    %v39 = vpop.permute.xlu0 %38
    %40 = vset.pattern.permute.xlu0 0
    %41 = vperm.xlu0 %40, %v30
    %v42 = vpop.permute.xlu0 %41
    %43 = vset.pattern.permute.xlu0 0
    %44 = vperm.xlu0 %43, %v31
    %v45 = vpop.permute.xlu0 %44
    %vm46 = vcmp.eq.s32.totalorder %v33, %v36
    %vm47 = vcmp.eq.s32.totalorder %v33, %v39
    %vm48 = vcmp.eq.s32.totalorder %v33, %v42
    %vm49 = vcmp.eq.s32.totalorder %v33, %v45
    %v50 = vsel %vm46, 1, 0
    %v51 = vsel %vm47, 1, 0
    %v52 = vsel %vm48, 1, 0
    %v53 = vsel %vm49, 1, 0
    %v54 = vcvt.s32.f32 %v50
    %v55 = vcvt.s32.f32 %v51
    %v56 = vcvt.s32.f32 %v52
    %v57 = vcvt.s32.f32 %v53
    %v58 = vld [vmem:[%s1] sm:$0xff]
    %v59 = vld [vmem:[%s1 + $0x8] sm:$0xff]
    %v60 = vld [vmem:[%s1 + $0x10] sm:$0xff]
    %v61 = vld [vmem:[%s1 + $0x18] sm:$0xff]
    %v62 = vld [vmem:[%s1 + $0x20] sm:$0xff]
    %v63 = vld [vmem:[%s1 + $0x28] sm:$0xff]
    %v64 = vld [vmem:[%s1 + $0x30] sm:$0x3]
    %vm65 = vcmask 408576
    %v67 = vsel %vm65, %v54, 0
    %v70 = vsel %vm65, %v55, 0
    %v73 = vsel %vm65, %v56, 0
    %v76 = vsel %vm65, %v57, 0
    %vm78 = vcmask 1041408
    %v80 = vsel %vm78, %v64, 0
    %82 = vmatprep.subr.mxu0 0.0
    %83 = vmatpush1.msra.mxu0 %v58
    %84 = vmatprep.subr.mxu0 0.0
    %85 = vmatpush1.msra.mxu0 %v59
    %86 = vmatprep.subr.mxu0 0.0
    %87 = vmatpush1.msra.mxu0 %v60
    %88 = vmatprep.subr.mxu0 0.0
    %89 = vmatpush1.msra.mxu0 %v61
    %90 = vmatprep.subr.mxu0 0.0
    %91 = vmatpush1.msra.mxu0 %v62
    %92 = vmatprep.subr.mxu0 0.0
    %93 = vmatpush1.msra.mxu0 %v63
    %94 = vmatprep.subr.mxu0 0.0
    %95 = vmatpush1.msra.mxu0 %v80
    %96 = vmatprep.subr.mxu0 0.0
    %97 = vmatpush1.msra.mxu0 0.0
    %98 = vmatprep.subr.mxu0 0.0
    %99 = vmatpush1.msra.mxu0 0.0
    %100 = vmatprep.subr.mxu0 0.0
    %101 = vmatpush1.msra.mxu0 0.0
    %102 = vmatprep.subr.mxu0 0.0
    %103 = vmatpush1.msra.mxu0 0.0
    %104 = vmatprep.subr.mxu0 0.0
    %105 = vmatpush1.msra.mxu0 0.0
    %106 = vmatprep.subr.mxu0 0.0
    %107 = vmatpush1.msra.mxu0 0.0
    %108 = vmatprep.subr.mxu0 0.0
    %109 = vmatpush1.msra.mxu0 0.0
    %110 = vmatprep.subr.mxu0 0.0
    %111 = vmatpush1.msra.mxu0 0.0
    %112 = vmatprep.subr.mxu0 0.0
    %113 = vmatpush1.msra.mxu0 0.0
    %114 = vmatprep.subr.mxu0 0.0
    %115 = vmatpush1.msra.mxu0 0.0
    %116 = vmatprep.subr.mxu0 0.0
    %117 = vmatpush1.msra.mxu0 0.0
    %118 = vmatprep.subr.mxu0 0.0
    %119 = vmatpush1.msra.mxu0 0.0
    %120 = vmatprep.subr.mxu0 0.0
    %121 = vmatpush1.msra.mxu0 0.0
    %122 = vmatprep.subr.mxu0 0.0
    %123 = vmatpush1.msra.mxu0 0.0
    %124 = vmatprep.subr.mxu0 0.0
    %125 = vmatpush1.msra.mxu0 0.0
    %126 = vmatprep.subr.mxu0 0.0
    %127 = vmatpush1.msra.mxu0 0.0
    %128 = vmatprep.subr.mxu0 0.0
    %129 = vmatpush1.msra.mxu0 0.0
    %130 = vmatprep.subr.mxu0 0.0
    %131 = vmatpush1.msra.mxu0 0.0
    %132 = vmatprep.subr.mxu0 0.0
    %133 = vmatpush1.msra.mxu0 0.0
    %134 = vmatprep.subr.mxu0 0.0
    %135 = vmatpush1.msra.mxu0 0.0
    %136 = vmatprep.subr.mxu0 0.0
    %137 = vmatpush1.msra.mxu0 0.0
    %138 = vmatprep.subr.mxu0 0.0
    %139 = vmatpush1.msra.mxu0 0.0
    %140 = vmatprep.subr.mxu0 0.0
    %141 = vmatpush1.msra.mxu0 0.0
    %142 = vmatprep.subr.mxu0 0.0
    %143 = vmatpush1.msra.mxu0 0.0
    %144 = vmatprep.subr.mxu0 0.0
    %145 = vmatpush1.msra.mxu0 0.0
    %146 = vmatprep.mubr.f32.mxu0 0.0
    %147 = vmatmul.mubr.f32.gmra.mrb[0].mxu0 %v67
    %v148 = vpop.f32.mrb[0].mxu0
    %v149 = vadd.f32 0.0, %v148
    %v150 = vpop.f32.mrb[0].mxu0
    %151 = vmatprep.mubr.f32.mxu0 0.0
    %152 = vmatmul.mubr.f32.gmra.mrb[0].mxu0 %v70
    %v153 = vpop.f32.mrb[0].mxu0
    %v154 = vadd.f32 0.0, %v153
    %v155 = vpop.f32.mrb[0].mxu0
    %156 = vmatprep.mubr.f32.mxu0 0.0
    %157 = vmatmul.mubr.f32.gmra.mrb[0].mxu0 %v73
    %v158 = vpop.f32.mrb[0].mxu0
    %v159 = vadd.f32 0.0, %v158
    %v160 = vpop.f32.mrb[0].mxu0
    %161 = vmatprep.mubr.f32.mxu0 0.0
    %162 = vmatmul.mubr.f32.gmra.mrb[0].mxu0 %v76
    %v163 = vpop.f32.mrb[0].mxu0
    %v164 = vadd.f32 0.0, %v163
    %v165 = vpop.f32.mrb[0].mxu0
    %166 = vdwg.mxu0
    %v167 = vpack.c.bf16 %v154, %v149
    %v168 = vpack.c.bf16 %v164, %v159
    %v169 = vld [vmem:[%s2] sm:$0xff]
    %v170 = vld [vmem:[%s2 + $0x8] sm:$0xff]
    %v171 = vld [vmem:[%s2 + $0x10] sm:$0xff]
    %v172 = vld [vmem:[%s2 + $0x18] sm:$0xff]
    %v177 = vunpack.c.l.b16 %v169
    %v178 = vunpack.c.h.b16 %v169
    %v179 = vunpack.c.l.b16 %v170
    %v180 = vunpack.c.h.b16 %v170
    %v181 = vunpack.c.l.b16 %v171
    %v182 = vunpack.c.h.b16 %v171
    %v183 = vunpack.c.l.b16 %v172
    %v184 = vunpack.c.h.b16 %v172
    %v185 = vpack.c.b16 %v179, %v177
    %v186 = vpack.c.b16 %v180, %v178
    %v187 = vpack.c.b16 %v183, %v181
    %v188 = vpack.c.b16 %v184, %v182
    %vm193 = vcmask 261120
    %v195 = vsel %vm193, %v167, 0
    %v198 = vsel %vm193, %v168, 0
    %200 = vmatprep.subr.bf16.mxu0 %v186
    %201 = vmatpush1.bf16.msra.mxu0 %v185
    %202 = vmatprep.subr.bf16.mxu0 %v188
    %203 = vmatpush1.bf16.msra.mxu0 %v187
    %204 = vmatprep.subr.bf16.mxu0 0
    %205 = vmatpush1.bf16.msra.mxu0 0
    %206 = vmatprep.subr.bf16.mxu0 0
    %207 = vmatpush1.bf16.msra.mxu0 0
    %208 = vmatprep.subr.bf16.mxu0 0
    %209 = vmatpush1.bf16.msra.mxu0 0
    %210 = vmatprep.subr.bf16.mxu0 0
    %211 = vmatpush1.bf16.msra.mxu0 0
    %212 = vmatprep.subr.bf16.mxu0 0
    %213 = vmatpush1.bf16.msra.mxu0 0
    %214 = vmatprep.subr.bf16.mxu0 0
    %215 = vmatpush1.bf16.msra.mxu0 0
    %216 = vmatprep.subr.bf16.mxu0 0
    %217 = vmatpush1.bf16.msra.mxu0 0
    %218 = vmatprep.subr.bf16.mxu0 0
    %219 = vmatpush1.bf16.msra.mxu0 0
    %220 = vmatprep.subr.bf16.mxu0 0
    %221 = vmatpush1.bf16.msra.mxu0 0
    %222 = vmatprep.subr.bf16.mxu0 0
    %223 = vmatpush1.bf16.msra.mxu0 0
    %224 = vmatprep.subr.bf16.mxu0 0
    %225 = vmatpush1.bf16.msra.mxu0 0
    %226 = vmatprep.subr.bf16.mxu0 0
    %227 = vmatpush1.bf16.msra.mxu0 0
    %228 = vmatprep.subr.bf16.mxu0 0
    %229 = vmatpush1.bf16.msra.mxu0 0
    %230 = vmatprep.subr.bf16.mxu0 0
    %231 = vmatpush1.bf16.msra.mxu0 0
    %232 = vmatprep.mubr.bf16.mxu0 0
    %233 = vmatmul.mubr.bf16.gmra.mrb[0].mxu0 %v195
    %v234 = vpop.f32.mrb[0].mxu0
    %v235 = vadd.f32 0.0, %v234
    %v236 = vpop.f32.mrb[0].mxu0
    %v237 = vadd.f32 0.0, %v236
    %v238 = vpop.f32.mrb[0].mxu0
    %v239 = vadd.f32 0.0, %v238
    %v240 = vpop.f32.mrb[0].mxu0
    %v241 = vadd.f32 0.0, %v240
    %242 = vmatprep.mubr.bf16.mxu0 0
    %243 = vmatmul.mubr.bf16.gmra.mrb[0].mxu0 %v198
    %v244 = vpop.f32.mrb[0].mxu0
    %v245 = vadd.f32 0.0, %v244
    %v246 = vpop.f32.mrb[0].mxu0
    %v247 = vadd.f32 0.0, %v246
    %v248 = vpop.f32.mrb[0].mxu0
    %v249 = vadd.f32 0.0, %v248
    %v250 = vpop.f32.mrb[0].mxu0
    %v251 = vadd.f32 0.0, %v250
    %252 = vdwg.mxu0
    %vm257 = vcmask 1046528
    %v258 = vrot.slane %v235, 1
    %v259 = vrot.slane %v239, 1
    %v260 = vsel %vm257, %v258, %v259
    %v261 = vrot.slane %v245, 1
    %v262 = vrot.slane %v249, 1
    %v263 = vsel %vm257, %v261, %v262
    %264 = vrot.lane.b32.xlu0 %v260, 112
    %v265 = vpop.permute.xlu0 %264
    %266 = vrot.lane.b32.xlu0 %v259, 112
    %v267 = vpop.permute.xlu0 %266
    %268 = vrot.lane.b32.xlu0 %v263, 112
    %v269 = vpop.permute.xlu0 %268
    %270 = vrot.lane.b32.xlu0 %v262, 112
    %v271 = vpop.permute.xlu0 %270
    %v276 = vadd.f32 %v235, %v265
    %v277 = vadd.f32 %v239, %v267
    %v278 = vadd.f32 %v245, %v269
    %v279 = vadd.f32 %v249, %v271
    %vm280 = vcmask 130048
    %v281 = vsel %vm280, %v276, -inf
    %vm282 = vcmask 129024
    %v283 = vsel %vm282, %v277, -inf
    %v284 = vmax.f32 %v281, %v283
    %v285 = vrot.slane %v284, 4
    %v286 = vmax.f32 %v284, %v285
    %v287 = vrot.slane %v286, 2
    %v288 = vmax.f32 %v286, %v287
    %v289 = vrot.slane %v288, 1
    %v290 = vmax.f32 %v288, %v289
    %v291 = vsel %vm280, %v278, -inf
    %v292 = vsel %vm282, %v279, -inf
    %v293 = vmax.f32 %v291, %v292
    %v294 = vrot.slane %v293, 4
    %v295 = vmax.f32 %v293, %v294
    %v296 = vrot.slane %v295, 2
    %v297 = vmax.f32 %v295, %v296
    %v298 = vrot.slane %v297, 1
    %v299 = vmax.f32 %v297, %v298
    %vm300 = vcmask 1045504
    %v301 = vrot.slane %v235, 2
    %v302 = vrot.slane %v239, 2
    %v303 = vsel %vm300, %v301, %v302
    %v304 = vrot.slane %v245, 2
    %v305 = vrot.slane %v249, 2
    %v306 = vsel %vm300, %v304, %v305
    %307 = vrot.lane.b32.xlu0 %v303, 96
    %v308 = vpop.permute.xlu0 %307
    %309 = vrot.lane.b32.xlu0 %v302, 96
    %v310 = vpop.permute.xlu0 %309
    %311 = vrot.lane.b32.xlu0 %v306, 96
    %v312 = vpop.permute.xlu0 %311
    %313 = vrot.lane.b32.xlu0 %v305, 96
    %v314 = vpop.permute.xlu0 %313
    %v319 = vadd.f32 %v276, %v308
    %v320 = vadd.f32 %v277, %v310
    %v321 = vadd.f32 %v278, %v312
    %v322 = vadd.f32 %v279, %v314
    %vm323 = vcmask 392448
    %v324 = vsel %vm323, %v319, -inf
    %vm325 = vcmask 390400
    %v326 = vsel %vm325, %v320, -inf
    %v327 = vmax.f32 %v324, %v326
    %v328 = vrot.slane %v327, 4
    %v329 = vmax.f32 %v327, %v328
    %v330 = vrot.slane %v329, 2
    %v331 = vmax.f32 %v329, %v330
    %v332 = vrot.slane %v331, 1
    %v333 = vmax.f32 %v331, %v332
    %v334 = vsel %vm323, %v321, -inf
    %v335 = vsel %vm325, %v322, -inf
    %v336 = vmax.f32 %v334, %v335
    %v337 = vrot.slane %v336, 4
    %v338 = vmax.f32 %v336, %v337
    %v339 = vrot.slane %v338, 2
    %v340 = vmax.f32 %v338, %v339
    %v341 = vrot.slane %v340, 1
    %v342 = vmax.f32 %v340, %v341
    %vm347 = vcmask 1044480
    %v348 = vrot.slane %v237, 3
    %v349 = vrot.slane %v241, 3
    %v350 = vsel %vm347, %v348, %v349
    %v351 = vrot.slane %v247, 3
    %v352 = vrot.slane %v251, 3
    %v353 = vsel %vm347, %v351, %v352
    %354 = vrot.lane.b32.xlu0 %v350, 80
    %v355 = vpop.permute.xlu0 %354
    %356 = vrot.lane.b32.xlu0 %v349, 80
    %v357 = vpop.permute.xlu0 %356
    %358 = vrot.lane.b32.xlu0 %v353, 80
    %v359 = vpop.permute.xlu0 %358
    %360 = vrot.lane.b32.xlu0 %v352, 80
    %v361 = vpop.permute.xlu0 %360
    %v366 = vadd.f32 %v319, %v355
    %v367 = vadd.f32 %v320, %v357
    %v368 = vadd.f32 %v321, %v359
    %v369 = vadd.f32 %v322, %v361
    %vm370 = vcmask 786048
    %v371 = vsel %vm370, %v366, -inf
    %vm372 = vcmask 782976
    %v373 = vsel %vm372, %v367, -inf
    %v374 = vmax.f32 %v371, %v373
    %v375 = vrot.slane %v374, 4
    %v376 = vmax.f32 %v374, %v375
    %v377 = vrot.slane %v376, 2
    %v378 = vmax.f32 %v376, %v377
    %v379 = vrot.slane %v378, 1
    %v380 = vmax.f32 %v378, %v379
    %v381 = vsel %vm370, %v368, -inf
    %v382 = vsel %vm372, %v369, -inf
    %v383 = vmax.f32 %v381, %v382
    %v384 = vrot.slane %v383, 4
    %v385 = vmax.f32 %v383, %v384
    %v386 = vrot.slane %v385, 2
    %v387 = vmax.f32 %v385, %v386
    %v388 = vrot.slane %v387, 1
    %v389 = vmax.f32 %v387, %v388
    %vm392 = vcmask 1041409
    %v393 = vsel %vm392, %v299, %v290
    %v397 = vsel %vm392, %v342, %v333
    %398 = vrot.lane.b32.xlu0 %v397, 112
    %v399 = vpop.permute.xlu0 %398
    %v403 = vsel %vm392, %v389, %v380
    %404 = vrot.lane.b32.xlu0 %v403, 80
    %v405 = vpop.permute.xlu0 %404
    %v407 = vsel %vm280, %v393, %v399
    %v408 = vsel %vm193, %v407, %v405
    %v409 = vld [vmem:[%s3] sm:$0x1]
    %v411 = vlaneseq
    %v412 = vshrl.u32 %v411, 7
    %v413 = vsub.s32 0, %v412
    %v414 = vrot.slane %v409, %v413
    %v416 = vadd.f32 %v408, %v414
    %v417 = vmax.f32 %v416, 0.0
    %v418 = vld [vmem:[%s4] sm:$0x3]
    %v419 = vmul.f32 %v417, %v418
    %v420 = vpack.c.bf16 %v419, %v419
    %v421 = vld [vmem:[%s5] sm:$0xf]
    %v422 = vld [vmem:[%s5 + $0x4] sm:$0xf]
    %v423 = vld [vmem:[%s5 + $0x8] sm:$0xf]
    %v424 = vld [vmem:[%s5 + $0xc] sm:$0xf]
    %v425 = vld [vmem:[%s5 + $0x10] sm:$0xf]
    %v426 = vld [vmem:[%s5 + $0x14] sm:$0xf]
    %v427 = vld [vmem:[%s6] sm:$0x1]
    %v429 = vlaneseq
    %v430 = vshrl.u32 %v429, 7
    %v431 = vsub.s32 0, %v430
    %v432 = vrot.slane %v427, %v431
    %v440 = vunpack.c.l.b16 %v421
    %v441 = vunpack.c.l.b16 %v422
    %v442 = vunpack.c.l.b16 %v423
    %v443 = vunpack.c.l.b16 %v424
    %v444 = vunpack.c.l.b16 %v425
    %v445 = vunpack.c.l.b16 %v426
    %v446 = vpack.c.b16 %v441, %v440
    %v447 = vpack.c.b16 %v443, %v442
    %v448 = vpack.c.b16 %v445, %v444
    %vm452 = vcmask 392192
    %v454 = vsel %vm452, %v420, 0
    %456 = vmatprep.subr.bf16.mxu0 0
    %457 = vmatpush1.bf16.msra.mxu0 %v446
    %458 = vmatprep.subr.bf16.mxu0 0
    %459 = vmatpush1.bf16.msra.mxu0 %v447
    %460 = vmatprep.subr.bf16.mxu0 0
    %461 = vmatpush1.bf16.msra.mxu0 %v448
    %462 = vmatprep.subr.bf16.mxu0 0
    %463 = vmatpush1.bf16.msra.mxu0 0
    %464 = vmatprep.subr.bf16.mxu0 0
    %465 = vmatpush1.bf16.msra.mxu0 0
    %466 = vmatprep.subr.bf16.mxu0 0
    %467 = vmatpush1.bf16.msra.mxu0 0
    %468 = vmatprep.subr.bf16.mxu0 0
    %469 = vmatpush1.bf16.msra.mxu0 0
    %470 = vmatprep.subr.bf16.mxu0 0
    %471 = vmatpush1.bf16.msra.mxu0 0
    %472 = vmatprep.subr.bf16.mxu0 0
    %473 = vmatpush1.bf16.msra.mxu0 0
    %474 = vmatprep.subr.bf16.mxu0 0
    %475 = vmatpush1.bf16.msra.mxu0 0
    %476 = vmatprep.subr.bf16.mxu0 0
    %477 = vmatpush1.bf16.msra.mxu0 0
    %478 = vmatprep.subr.bf16.mxu0 0
    %479 = vmatpush1.bf16.msra.mxu0 0
    %480 = vmatprep.subr.bf16.mxu0 0
    %481 = vmatpush1.bf16.msra.mxu0 0
    %482 = vmatprep.subr.bf16.mxu0 0
    %483 = vmatpush1.bf16.msra.mxu0 0
    %484 = vmatprep.subr.bf16.mxu0 0
    %485 = vmatpush1.bf16.msra.mxu0 0
    %486 = vmatprep.subr.bf16.mxu0 0
    %487 = vmatpush1.bf16.msra.mxu0 0
    %488 = vmatprep.mubr.bf16.mxu0 0
    %489 = vmatmul.mubr.bf16.gmra.mrb[0].mxu0 %v454
    %v490 = vpop.f32.mrb[0].mxu0
    %v491 = vadd.f32 %v432, %v490
    %v492 = vpop.f32.mrb[0].mxu0
    %v493 = vpop.f32.mrb[0].mxu0
    %v494 = vpop.f32.mrb[0].mxu0
    %495 = vdwg.mxu0
    %vm496 = vcmask 58368
    %497 = vst.msk [vmem:[#allocation2] sm:$0x3] %vm496, %v491
    // Predicated region
    $region30: #{tpu_custom_call.1} parent=1 // pred_check
      _
    $region31: #{tpu_custom_call.1} parent=1 // pred_check_branch
      %499 = sbr.rel (0) target = $region33
    $region32: #{tpu_custom_call.1} parent=1 // pred_region
      %s501 = ssub.s32 32, 32
      %502 = vsyncadd [#allocation3], %s501
      %s504 = sshll.u32 [#allocation2], 4
      %s505 = int_to_ptr.vmem [resolvable:$true] %s504
      %507 = dma.vmem_to_hbm [thread:$0]  %s505, 32, %s7, [#allocation3]
    $region33: #{tpu_custom_call.1} parent=1 // pred_fallthru
      _
    // Predicated region
    $region34: #{tpu_custom_call.1} parent=1 // pred_check
      _
    $region35: #{tpu_custom_call.1} parent=1 // pred_check_branch
      %509 = sbr.rel (0) target = $region37
    $region36: #{tpu_custom_call.1} parent=1 // pred_region
      %510 = dma.done [#allocation3], 32
    $region37: #{tpu_custom_call.1} parent=1 // pred_fallthru
      _
    %511 = vsyncpa [#allocation3], 1

</llo_original>
